<compile_context>
chip_gen: v5e
topology: v5e:2x2
jax: 0.10.0
libtpu: 0.0.40
codegen_flags: <defaults>
</compile_context>

<pallas_src>
import jax
import jax.numpy as jnp
from jax import lax
from jax.experimental import pallas as pl
from jax.experimental.pallas import tpu as pltpu


def _largest_divisor_multiple(n, base, cap):
    """Largest d with d | n, d % base == 0 and d <= cap; None if there is none."""
    best = None
    d = base
    limit = min(n, cap)
    while d <= limit:
        if n % d == 0:
            best = d
        d += base
    return best


def _select_budgets():
    """(per-input-block byte budget, vmem_limit_bytes), generation dependent."""
    budget, vmem_limit = 8 * 1024 * 1024, 32 * 1024 * 1024  # safe fallback
    try:
        info = pltpu.get_tpu_info()
        vmem_cap = getattr(info, "vmem_capacity_bytes", None)
        if vmem_cap is not None:
            if vmem_cap >= 96 * 1024 * 1024:
                # v5e / v6e class (128 MiB VMEM): big blocks amortize the
                # ~0.35 us per-grid-step overhead.
                budget, vmem_limit = 16 * 1024 * 1024, 48 * 1024 * 1024
            else:
                # v7x class (64 MiB VMEM): modest bump only — 2 x 12 MiB
                # double-buffered input still fits the 32 MiB scoped limit.
                budget, vmem_limit = 12 * 1024 * 1024, 32 * 1024 * 1024
    except Exception:
        pass
    return budget, vmem_limit


def _make_kernel(tile_hw, inv_hw):
    n_full, rem = divmod(tile_hw, 128)

    def kernel(x_ref, o_ref, acc_ref):
        j = pl.program_id(1)

        @pl.when(j == 0)
        def _init():
            acc_ref[...] = jnp.zeros_like(acc_ref)

        # Lane-parallel accumulation: each (tile_nc, 128) chunk is added into
        # the (tile_nc, 128) f32 accumulator on the VPU.  The cast happens per
        # chunk, so sub-32-bit inputs never get a full-block f32 copy.
        if n_full > 0:
            if n_full <= 16:
                for k in range(n_full):
                    acc_ref[...] += (
                        x_ref[:, k * 128:(k + 1) * 128].astype(jnp.float32))
            else:
                def chunk_body(k, carry):
                    start = pl.multiple_of(k * 128, 128)
                    acc_ref[...] += (
                        x_ref[:, pl.ds(start, 128)].astype(jnp.float32))
                    return carry
                lax.fori_loop(0, n_full, chunk_body, 0, unroll=8)
        if rem > 0:
            acc_ref[:, :rem] += (
                x_ref[:, n_full * 128:n_full * 128 + rem].astype(jnp.float32))

        @pl.when(j == pl.num_programs(1) - 1)
        def _finalize():
            # Single cross-lane (XLU) reduce per NC tile, then scale and store.
            total = jnp.sum(acc_ref[...], axis=-1, keepdims=True)
            o_ref[...] = (total * inv_hw).astype(o_ref.dtype)

    return kernel


def global_avg_pool(x):
    """Equivalent of F.avg_pool2d(x, kernel_size=[H, W]) for NCHW input."""
    N, C, H, W = x.shape
    NC, HW = N * C, H * W
    itemsize = jnp.dtype(x.dtype).itemsize
    # dtype-aware sublane base: packed dtypes want 16/32-row multiples.
    base = {4: 8, 2: 16, 1: 32}.get(itemsize, 8)
    budget, vmem_limit = _select_budgets()

    x2d = x.reshape(NC, HW)  # zero-cost view; lanes = HW
    nc_e, hw_e = NC, HW

    def pick_nc(nc):
        cap = 256
        if nc >= 2 * base:
            cap = min(cap, max(base, nc // 2))  # >= 2 NC tiles -> both v7x TCs busy
        t = _largest_divisor_multiple(nc, base, cap)
        return t if t is not None else nc       # not a multiple of base: full dim

    def pick_hw(hw, tile_nc):
        max_hw = max(128, budget // max(1, tile_nc * itemsize))
        t = _largest_divisor_multiple(hw, 128, max_hw)
        return t if t is not None else hw       # not a multiple of 128: full dim

    tile_nc = pick_nc(nc_e)
    tile_hw = pick_hw(hw_e, tile_nc)

    def over_budget():
        return tile_nc * tile_hw * itemsize > budget

    # Fallback ladder for shapes whose dims cannot be tiled directly.
    if over_budget() and nc_e % base == 0:
        smaller = _largest_divisor_multiple(
            nc_e, base, max(base, budget // max(1, tile_hw * itemsize)))
        if smaller is not None:
            tile_nc = smaller
    if over_budget() and hw_e % 128 != 0:
        # Zero-pad HW to a multiple of 128 so the reduction axis can be tiled.
        # Zeros do not change the sum; the divisor below stays the true H*W.
        hw_e = ((hw_e + 127) // 128) * 128
        x2d = jnp.pad(x2d, ((0, 0), (0, hw_e - HW)))
        tile_hw = pick_hw(hw_e, tile_nc)
    if over_budget() and nc_e % base != 0:
        # Zero-pad NC to a multiple of the sublane base; extra rows are
        # sliced off the output below.
        nc_e = ((nc_e + base - 1) // base) * base
        x2d = jnp.pad(x2d, ((0, nc_e - NC), (0, 0)))
        tile_nc = pick_nc(nc_e)
        tile_hw = pick_hw(hw_e, tile_nc)
        if over_budget():
            smaller = _largest_divisor_multiple(
                nc_e, base, max(base, budget // max(1, tile_hw * itemsize)))
            if smaller is not None:
                tile_nc = smaller

    grid = (pl.cdiv(nc_e, tile_nc), pl.cdiv(hw_e, tile_hw))
    inv_hw = 1.0 / float(HW)  # true H*W, NOT the (possibly padded) tile width

    kernel = _make_kernel(tile_hw, inv_hw)

    out2d = pl.pallas_call(
        kernel,
        out_shape=jax.ShapeDtypeStruct((nc_e, 1), x.dtype),
        grid_spec=pltpu.PrefetchScalarGridSpec(
            num_scalar_prefetch=0,
            grid=grid,
            in_specs=[pl.BlockSpec((tile_nc, tile_hw), lambda i, j: (i, j))],
            out_specs=pl.BlockSpec((tile_nc, 1), lambda i, j: (i, 0)),
            scratch_shapes=[pltpu.VMEM((tile_nc, 128), jnp.float32)],
        ),
        compiler_params=pltpu.CompilerParams(
            dimension_semantics=("parallel", "arbitrary"),
            vmem_limit_bytes=vmem_limit,
        ),
    )(x2d)

    if nc_e != NC:
        out2d = out2d[:NC]
    return out2d.reshape(N, C, 1, 1)


if __name__ == "__main__":
    key = jax.random.PRNGKey(0)

    # Main check: shape implied by the module (NCHW), f32.
    N, C, H, W = 2, 4, 16, 16
    x = jax.random.normal(key, (N, C, H, W), dtype=jnp.float32)
    out = jax.block_until_ready(global_avg_pool(x))
    ref = jnp.mean(x, axis=(2, 3), keepdims=True)
    assert out.shape == (N, C, 1, 1), out.shape
    assert jnp.allclose(out, ref, atol=1e-5, rtol=1e-5), float(jnp.max(jnp.abs(out - ref)))

    # Odd shape: exercises the sub-128-lane remainder path (HW = 63, NC = 3).
    x2 = jax.random.normal(key, (1, 3, 7, 9), dtype=jnp.float32)
    out2 = jax.block_until_ready(global_avg_pool(x2))
    ref2 = jnp.mean(x2, axis=(2, 3), keepdims=True)
    assert out2.shape == (1, 3, 1, 1), out2.shape
    assert jnp.allclose(out2, ref2, atol=1e-5, rtol=1e-5), float(jnp.max(jnp.abs(out2 - ref2)))

    print("KERNEL_OK")
</pallas_src>

<mosaic_0001>
module attributes {stable_mosaic.version = 11 : i64} {
  func.func @kernel(%arg0: i32, %arg1: i32, %arg2: memref<8x256xf32, #tpu.memory_space<vmem>>, %arg3: memref<8x1xf32, #tpu.memory_space<vmem>>, %arg4: memref<8x128xf32, #tpu.memory_space<vmem>>) attributes {dimension_semantics = [#tpu.dimension_semantics<parallel>, #tpu.dimension_semantics<arbitrary>], iteration_bounds = array<i64: 1, 1>, scalar_prefetch = 0 : i64, scratch_operands = 1 : i64, tpu.core_type = #tpu.core_type<tc>, window_params = [{transform_indices = @transform_0, window_bounds = array<i64: 8, 256>}, {transform_indices = @transform_1, window_bounds = array<i64: 8, 1>}]} {
    %c0_i32 = arith.constant 0 : i32
    %0 = arith.cmpi eq, %arg1, %c0_i32 : i32
    %1 = arith.extui %0 : i1 to i32
    %c0_i32_0 = arith.constant 0 : i32
    %2 = arith.cmpi ne, %1, %c0_i32_0 : i32
    scf.if %2 {
      %cst = arith.constant 0.000000e+00 : f32
      %14 = vector.broadcast %cst : f32 to vector<8x128xf32>
      %c0_13 = arith.constant 0 : index
      %c0_14 = arith.constant 0 : index
      %15 = vector.load %arg4[%c0_13, %c0_14] : memref<8x128xf32, #tpu.memory_space<vmem>>, vector<8x128xf32>
      tpu.vector_store %arg4[%c0_13, %c0_14], %14 {strides = array<i32>} : memref<8x128xf32, #tpu.memory_space<vmem>>, vector<8x128xf32>,
    } else {
    }
    %c0 = arith.constant 0 : index
    %c0_1 = arith.constant 0 : index
    %3 = vector.load %arg4[%c0, %c0_1] : memref<8x128xf32, #tpu.memory_space<vmem>>, vector<8x128xf32>
    %c0_2 = arith.constant 0 : index
    %c0_3 = arith.constant 0 : index
    %4 = vector.load %arg2[%c0_2, %c0_3] : memref<8x256xf32, #tpu.memory_space<vmem>>, vector<8x128xf32>
    %5 = arith.addf %3, %4 : vector<8x128xf32>
    %c0_4 = arith.constant 0 : index
    %c0_5 = arith.constant 0 : index
    %6 = vector.load %arg4[%c0_4, %c0_5] : memref<8x128xf32, #tpu.memory_space<vmem>>, vector<8x128xf32>
    tpu.vector_store %arg4[%c0_4, %c0_5], %5 {strides = array<i32>} : memref<8x128xf32, #tpu.memory_space<vmem>>, vector<8x128xf32>,
    %c0_6 = arith.constant 0 : index
    %c0_7 = arith.constant 0 : index
    %7 = vector.load %arg4[%c0_6, %c0_7] : memref<8x128xf32, #tpu.memory_space<vmem>>, vector<8x128xf32>
    %c0_8 = arith.constant 0 : index
    %c128 = arith.constant 128 : index
    %8 = vector.load %arg2[%c0_8, %c128] : memref<8x256xf32, #tpu.memory_space<vmem>>, vector<8x128xf32>
    %9 = arith.addf %7, %8 : vector<8x128xf32>
    %c0_9 = arith.constant 0 : index
    %c0_10 = arith.constant 0 : index
    %10 = vector.load %arg4[%c0_9, %c0_10] : memref<8x128xf32, #tpu.memory_space<vmem>>, vector<8x128xf32>
    tpu.vector_store %arg4[%c0_9, %c0_10], %9 {strides = array<i32>} : memref<8x128xf32, #tpu.memory_space<vmem>>, vector<8x128xf32>,
    %c0_i32_11 = arith.constant 0 : i32
    %11 = arith.cmpi eq, %arg1, %c0_i32_11 : i32
    %12 = arith.extui %11 : i1 to i32
    %c0_i32_12 = arith.constant 0 : i32
    %13 = arith.cmpi ne, %12, %c0_i32_12 : i32
    scf.if %13 {
      %c0_13 = arith.constant 0 : index
      %c0_14 = arith.constant 0 : index
      %14 = vector.load %arg4[%c0_13, %c0_14] : memref<8x128xf32, #tpu.memory_space<vmem>>, vector<8x128xf32>
      %cst = arith.constant dense<0.000000e+00> : vector<8xf32>
      %15 = vector.multi_reduction <add>, %14, %cst [1] : vector<8x128xf32> to vector<8xf32>
      %16 = vector.shape_cast %15 : vector<8xf32> to vector<8x1xf32>
      %cst_15 = arith.constant 3.906250e-03 : f32
      %17 = vector.broadcast %cst_15 : f32 to vector<8x1xf32>
      %18 = arith.mulf %16, %17 : vector<8x1xf32>
      %c0_16 = arith.constant 0 : index
      %c0_17 = arith.constant 0 : index
      %19 = vector.load %arg3[%c0_16, %c0_17] : memref<8x1xf32, #tpu.memory_space<vmem>>, vector<8x1xf32>
      tpu.vector_store %arg3[%c0_16, %c0_17], %18 {strides = array<i32>} : memref<8x1xf32, #tpu.memory_space<vmem>>, vector<8x1xf32>,
    } else {
    }
    return
  }
  func.func @transform_0(%arg0: i32, %arg1: i32) -> (i32, i32) {
    %c0_i32 = arith.constant 0 : i32
    return %arg0, %arg1 : i32, i32
  }
  func.func @transform_1(%arg0: i32, %arg1: i32) -> (i32, i32) {
    %c0_i32 = arith.constant 0 : i32
    %c0_i32_0 = arith.constant 0 : i32
    return %arg0, %c0_i32 : i32, i32
  }
}

</mosaic_0001>

<llo_original>
// kernel: tpu_custom_call.1
$region0: #{tpu_custom_call.1}
  #allocation0 [shape = 'u32[]', space=smem, size = 0x4, offset = 0x4, fixed_abs, tag = 'smem constant byte address 0x4 - core index']
  #allocation1 [shape = 'u32[72,128]{1,0:T(1,128)}', space=vmem, size = 0x9000, scoped, tag = 'internal scratch']
  #allocation2 [shape = 'f32[8,128]{1,0:T(8,128)}', space=vmem, size = 0x1000, scoped, tag = 'scratch operand']
  %s0 = inlined_call_operand.hbm [shape: f32[8,256], index: 0, kind: input, shape index: {}]
  %s1 = inlined_call_operand.vmem [shape: f32[8,1], index: 1, kind: output, shape index: {}]
  %s2 = sld [smem:[#allocation0]]
  $region26: #{tpu_custom_call.1} parent=0
    _
  %s4 = ssub.s32 1, %s2
  %s5 = scalar_select 0, %s4, %s2
  $region1: #{tpu_custom_call.1} parent=0
    #allocation3 [shape = 'u8[8192]{0}', space=vmem, size = 0x2000, scoped, tag = 'input window, operand 0, single buffered']
    #allocation4 [shape = 's32[1]{0}', space=sflag, size = 0x4, scoped, tag = 'scoped memory for tpu_custom_call.1']
    %6 = vsyncpa [#allocation4], 0
    // Predicated region
    $region2: #{tpu_custom_call.1} parent=1 // pred_check
      _
    $region3: #{tpu_custom_call.1} parent=1 // pred_check_branch
      %8 = sbr.rel (0) target = $region5
    $region4: #{tpu_custom_call.1} parent=1 // pred_region
      %10 = vsyncadd [#allocation4], 0
      %s12 = sshll.u32 %s0, 4
      %s13 = int_to_ptr.hbm [resolvable:$true] %s12
      %s14 = sshll.u32 [#allocation3], 4
      %s15 = int_to_ptr.vmem [resolvable:$true] %s14
      %17 = dma.hbm_to_vmem [thread:$0]  %s13, 256, %s15, [#allocation4]
    $region5: #{tpu_custom_call.1} parent=1 // pred_fallthru
      _
    // Predicated region
    $region6: #{tpu_custom_call.1} parent=1 // pred_check
      _
    $region7: #{tpu_custom_call.1} parent=1 // pred_check_branch
      %19 = sbr.rel (0) target = $region9
    $region8: #{tpu_custom_call.1} parent=1 // pred_region
      %21 = dma.done [#allocation4], 256
    $region9: #{tpu_custom_call.1} parent=1 // pred_fallthru
      _
    %p22 = scmp.eq.s32.totalorder 0, 0
    // Predicated region
    $region10: #{tpu_custom_call.1} parent=1 // pred_check
      %p23 = pneg %p22
    $region11: #{tpu_custom_call.1} parent=1 // pred_check_branch
      %25 = sbr.rel (%p23) target = $region13
    $region12: #{tpu_custom_call.1} parent=1 // pred_region
      %26 = vst [vmem:[#allocation2] sm:$0xff] 0.0
    $region13: #{tpu_custom_call.1} parent=1 // pred_fallthru
      _
    %v27 = vld [vmem:[#allocation2] sm:$0xff]
    %v28 = vld [vmem:[#allocation3] sm:$0xff]
    %v29 = vadd.f32 %v27, %v28
    %30 = vst [vmem:[#allocation2] sm:$0xff] %v29
    %v31 = vld [vmem:[#allocation2] sm:$0xff]
    %v32 = vld [vmem:[#allocation3 + $0x8] sm:$0xff]
    %v33 = vadd.f32 %v31, %v32
    %34 = vst [vmem:[#allocation2] sm:$0xff] %v33
    // Predicated region
    $region14: #{tpu_custom_call.1} parent=1 // pred_check
      %p35 = pneg %p22
    $region15: #{tpu_custom_call.1} parent=1 // pred_check_branch
      %37 = sbr.rel (%p35) target = $region17
    $region16: #{tpu_custom_call.1} parent=1 // pred_region
      %v38 = vld [vmem:[#allocation2] sm:$0xff]
      %39 = vadd.xlane.f32.xlu0 %v38
      %v40 = vpop.xlane.xlu0 %39
      %v41 = vmul.f32 %v40, 0.00390625
      %vm42 = vcmask 7168
      %43 = vst.msk [vmem:[%s1] sm:$0xff] %vm42, %v41
    $region17: #{tpu_custom_call.1} parent=1 // pred_fallthru
      _
    // Predicated region
    $region18: #{tpu_custom_call.1} parent=1 // pred_check
      _
    $region19: #{tpu_custom_call.1} parent=1 // pred_check_branch
      %45 = sbr.rel (0) target = $region21
    $region20: #{tpu_custom_call.1} parent=1 // pred_region
      _
    $region21: #{tpu_custom_call.1} parent=1 // pred_fallthru
      _
    // Predicated region
    $region22: #{tpu_custom_call.1} parent=1 // pred_check
      _
    $region23: #{tpu_custom_call.1} parent=1 // pred_check_branch
      %47 = sbr.rel (0) target = $region25
    $region24: #{tpu_custom_call.1} parent=1 // pred_region
      _
    $region25: #{tpu_custom_call.1} parent=1 // pred_fallthru
      _
    %48 = vsyncpa [#allocation4], 1

</llo_original>
